<compile_context>
chip_gen: v7x
topology: tpu7x:2x2x1
jax: 0.10.0
libtpu: 0.0.40
codegen_flags: <defaults>
</compile_context>

<pallas_src>
import functools

import jax
import jax.numpy as jnp
from jax.experimental import pallas as pl
from jax.experimental.pallas import tpu as pltpu

_LANES = 128


def _round_up(x, m):
    return ((x + m - 1) // m) * m


def _focusing_term(one_minus_pt, gamma):
    """(1 - pt) ** gamma, using VPU multiplies when gamma is a small static integer."""
    g = float(gamma)
    gi = int(round(g))
    if g == gi and gi == 0:
        return jnp.ones_like(one_minus_pt)
    if g == gi and 1 <= gi <= 8:
        r = one_minus_pt
        for _ in range(gi - 1):
            r = r * one_minus_pt
        return r
    # Non-integer gamma: base is clamped >= 0 by the caller, so power is NaN-safe.
    return jnp.power(one_minus_pt, g)


def _focal_loss_kernel(logits_ref, targets_ref, alpha_ref, out_ref, *,
                       gamma, n_valid, tile_n, partial_sum):
    # Lane-dense layout: samples on the 128-lane axis, classes on sublanes.
    logits = logits_ref[...].astype(jnp.float32)      # (C, TN)
    tgt = targets_ref[...].astype(jnp.int32)          # (1, TN) — int8/int16/int32 input
    alpha = alpha_ref[...].astype(jnp.float32)        # (C, 1)

    c, tn = logits.shape

    # Numerically-stable logsumexp over the class (sublane) axis.
    m = jnp.max(logits, axis=0, keepdims=True)                                   # (1, TN)
    lse = m + jnp.log(jnp.sum(jnp.exp(logits - m), axis=0, keepdims=True))       # (1, TN)

    # One one-hot mask, reused for both masked "gathers".
    class_ids = jax.lax.broadcasted_iota(jnp.int32, (c, tn), 0)
    one_hot = class_ids == tgt                                                   # (C, TN)

    tgt_logit = jnp.sum(jnp.where(one_hot, logits, 0.0), axis=0, keepdims=True)  # (1, TN)
    alpha_t = jnp.sum(jnp.where(one_hot, alpha, 0.0), axis=0, keepdims=True)     # (1, TN)

    ce = lse - tgt_logit                                                         # (1, TN)
    pt = jnp.exp(-ce)
    one_minus_pt = jnp.maximum(1.0 - pt, 0.0)   # clamp: rounding can push pt slightly > 1
    f_loss = alpha_t * _focusing_term(one_minus_pt, gamma) * ce                  # (1, TN)

    # Mask the <=127-column lane pad and any ragged-last-tile OOB garbage (garbage stays
    # lane-local, so the select fully neutralizes it).  int32 idx overflows only for
    # N > 2^31 samples — practically irrelevant.
    idx = pl.program_id(0) * tile_n + jax.lax.broadcasted_iota(jnp.int32, (1, tn), 1)
    f_loss = jnp.where(idx < n_valid, f_loss, 0.0)

    if partial_sum:
        # Per-tile partial sum -> one tiny lane-dense (8, 128) block per grid step.
        psum = jnp.sum(f_loss)
        r = jax.lax.broadcasted_iota(jnp.int32, (8, _LANES), 0)
        l = jax.lax.broadcasted_iota(jnp.int32, (8, _LANES), 1)
        out_ref[...] = jnp.where((r == 0) & (l == 0), psum, 0.0)
    else:
        out_ref[...] = f_loss   # lane-dense (TN multiple of 128) unmasked store


def _choose_tile_n(n_pad, c, in_bytes):
    """Batch-tile width (multiple of 128) sized by total per-step VMEM footprint."""
    per_col = (2 * c * in_bytes      # double-buffered logits input block
               + 2 * 4               # double-buffered targets block (worst case int32)
               + 28 * c              # (C, tn) f32/i32 in-kernel temporaries (no-reuse bound)
               + 64)                 # (1, tn) f32/i32 temporaries
    budget = 24 * 1024 * 1024        # stay well under the 32 MiB scoped-VMEM limit (v7x-safe)
    tn = budget // per_col
    # Keep the raw logits block itself <= ~4 MiB (already saturates HBM on all gens).
    tn = min(tn, (4 * 1024 * 1024) // max(c * in_bytes, 1))
    # Keep >= ~4 grid steps for large batches so the "parallel" axis shards across
    # v7x's two TensorCores and per-step overhead is hidden by pipelining.
    tn = min(tn, max(_LANES, _round_up(pl.cdiv(n_pad, 4), _LANES)))
    tn = max(_LANES, (tn // _LANES) * _LANES)
    return min(tn, n_pad)


def focal_loss(logits, targets, alpha=None, gamma=3.0, reduction="mean",
               logits_are_class_major=False):
    """Focal loss matching the PyTorch module.

    logits:  (N, C)  — or (C, N) when logits_are_class_major=True (avoids the transpose).
    targets: (N,) integer (int8/int16/int32 accepted; narrow dtypes cut HBM traffic).
    """
    if logits_are_class_major:
        c, n = logits.shape
        logits_cn = logits
    else:
        n, c = logits.shape
        # Layout plumbing: class-major (C, N) puts the batch on the 128-lane axis.
        # Produce logits class-major upstream (and pass logits_are_class_major=True)
        # to avoid this extra HBM read+write.
        logits_cn = jnp.transpose(logits, (1, 0))

    # Per-class weights; module's scalar-alpha case broadcasts to all classes.
    if alpha is None:
        alpha_vec = jnp.ones((c,), jnp.float32)
    else:
        alpha_arr = jnp.asarray(alpha, jnp.float32)
        alpha_vec = jnp.broadcast_to(alpha_arr, (c,)) if alpha_arr.ndim == 0 else alpha_arr
    alpha2d = alpha_vec.reshape(c, 1)

    # Targets: keep narrow integer dtypes through the DMA, cast to int32 in-kernel.
    t = targets
    if (not jnp.issubdtype(t.dtype, jnp.integer)) or jnp.dtype(t.dtype).itemsize > 4:
        t = t.astype(jnp.int32)

    in_bytes = jnp.dtype(logits.dtype).itemsize
    n_pad = max(_LANES, _round_up(n, _LANES))        # pad only to the lane size (<=127 cols)
    tn = _choose_tile_n(n_pad, c, in_bytes)
    num_tiles = pl.cdiv(n_pad, tn)

    pad_cols = n_pad - n
    if pad_cols:
        logits_cn = jnp.pad(logits_cn, ((0, 0), (0, pad_cols)))
        t2d = jnp.pad(t.reshape(1, n), ((0, 0), (0, pad_cols)))
    else:
        t2d = t.reshape(1, n)

    partial_sum = reduction in ("mean", "sum")
    kernel = functools.partial(
        _focal_loss_kernel, gamma=float(gamma), n_valid=n, tile_n=tn,
        partial_sum=partial_sum)

    in_specs = [
        pl.BlockSpec((c, tn), lambda i: (0, i)),   # logits (input dtype preserved)
        pl.BlockSpec((1, tn), lambda i: (0, i)),   # targets (narrow int ok)
        pl.BlockSpec((c, 1), lambda i: (0, 0)),    # alpha (resident, tiny)
    ]
    cparams = pltpu.CompilerParams(
        dimension_semantics=("parallel",),         # disjoint outputs, no carried state
        vmem_limit_bytes=32 * 1024 * 1024,
    )

    if partial_sum:
        partials = pl.pallas_call(
            kernel,
            out_shape=jax.ShapeDtypeStruct((8, num_tiles * _LANES), jnp.float32),
            grid=(num_tiles,),
            in_specs=in_specs,
            out_specs=pl.BlockSpec((8, _LANES), lambda i: (0, i)),
            compiler_params=cparams,
        )(logits_cn, t2d, alpha2d)
        total = jnp.sum(partials)                  # few KiB of partials (mostly zeros)
        if reduction == "mean":
            return total / jnp.float32(n)
        return total

    per_sample = pl.pallas_call(
        kernel,
        out_shape=jax.ShapeDtypeStruct((1, n_pad), jnp.float32),
        grid=(num_tiles,),
        in_specs=in_specs,
        out_specs=pl.BlockSpec((1, tn), lambda i: (0, i)),
        compiler_params=cparams,
    )(logits_cn, t2d, alpha2d)
    return per_sample[0, :n]                       # reduction='none'


def focal_loss_ref(logits, targets, alpha=None, gamma=3.0, reduction="mean"):
    """Pure-JAX reference mirroring the PyTorch FocalLoss forward."""
    logits = logits.astype(jnp.float32)
    idx = targets.astype(jnp.int32)
    lse = jax.nn.logsumexp(logits, axis=-1)
    ce = lse - jnp.take_along_axis(logits, idx[:, None], axis=-1)[:, 0]
    pt = jnp.exp(-ce)
    alpha_t = 1.0 if alpha is None else jnp.asarray(alpha, jnp.float32)[idx]
    fl = alpha_t * (1.0 - pt) ** gamma * ce
    if reduction == "mean":
        return fl.mean()
    if reduction == "sum":
        return fl.sum()
    return fl


if __name__ == "__main__":
    key = jax.random.PRNGKey(0)
    k1, k2, k3, k4 = jax.random.split(key, 4)

    # Case 1: small batch, explicit per-class alpha, gamma=3 (module default).
    N1, C1 = 8, 4
    logits1 = jax.random.normal(k1, (N1, C1), jnp.float32) * 2.0
    targets1 = jax.random.randint(k2, (N1,), 0, C1, dtype=jnp.int32)
    alpha1 = jnp.linspace(0.25, 1.0, C1, dtype=jnp.float32)

    loss1 = jax.block_until_ready(focal_loss(logits1, targets1, alpha1, gamma=3.0))
    ref1 = focal_loss_ref(logits1, targets1, alpha1, gamma=3.0)
    assert jnp.allclose(loss1, ref1, rtol=1e-4, atol=1e-6), (loss1, ref1)

    # Case 2: multi-tile grid, ragged masked tail, alpha=None, narrow int8 targets.
    N2, C2 = 1000, 4
    logits2 = jax.random.normal(k3, (N2, C2), jnp.float32)
    targets2 = jax.random.randint(k4, (N2,), 0, C2, dtype=jnp.int32).astype(jnp.int8)

    loss2 = jax.block_until_ready(focal_loss(logits2, targets2, None, gamma=3.0))
    ref2 = focal_loss_ref(logits2, targets2, None, gamma=3.0)
    assert jnp.allclose(loss2, ref2, rtol=1e-4, atol=1e-6), (loss2, ref2)

    print("KERNEL_OK")
</pallas_src>

<mosaic_0001>
module attributes {stable_mosaic.version = 11 : i64} {
  func.func @_focal_loss_kernel(%arg0: i32, %arg1: memref<4x128xf32, #tpu.memory_space<vmem>>, %arg2: memref<1x128xi32, #tpu.memory_space<vmem>>, %arg3: memref<4x1xf32, #tpu.memory_space<vmem>>, %arg4: memref<8x128xf32, #tpu.memory_space<vmem>>) attributes {dimension_semantics = [#tpu.dimension_semantics<parallel>], iteration_bounds = array<i64: 1>, scalar_prefetch = 0 : i64, scratch_operands = 0 : i64, tpu.core_type = #tpu.core_type<tc>, window_params = [{transform_indices = @transform_0, window_bounds = array<i64: 4, 128>}, {transform_indices = @transform_1, window_bounds = array<i64: 1, 128>}, {pipeline_mode = #tpu.pipeline_mode<synchronous>, transform_indices = @transform_2, window_bounds = array<i64: 4, 1>}, {transform_indices = @transform_3, window_bounds = array<i64: 8, 128>}]} {
    %c0 = arith.constant 0 : index
    %c0_0 = arith.constant 0 : index
    %0 = vector.load %arg1[%c0, %c0_0] : memref<4x128xf32, #tpu.memory_space<vmem>>, vector<4x128xf32>
    %c0_1 = arith.constant 0 : index
    %c0_2 = arith.constant 0 : index
    %1 = vector.load %arg2[%c0_1, %c0_2] : memref<1x128xi32, #tpu.memory_space<vmem>>, vector<1x128xi32>
    %c0_3 = arith.constant 0 : index
    %c0_4 = arith.constant 0 : index
    %2 = vector.load %arg3[%c0_3, %c0_4] : memref<4x1xf32, #tpu.memory_space<vmem>>, vector<4x1xf32>
    %cst = arith.constant dense<0xFF800000> : vector<128xf32>
    %3 = vector.multi_reduction <maximumf>, %0, %cst [0] : vector<4x128xf32> to vector<128xf32>
    %4 = vector.shape_cast %3 : vector<128xf32> to vector<1x128xf32>
    %5 = vector.broadcast %4 : vector<1x128xf32> to vector<4x128xf32>
    %6 = arith.subf %0, %5 : vector<4x128xf32>
    %7 = math.exp %6 : vector<4x128xf32>
    %cst_5 = arith.constant dense<0.000000e+00> : vector<128xf32>
    %8 = vector.multi_reduction <add>, %7, %cst_5 [0] : vector<4x128xf32> to vector<128xf32>
    %9 = vector.shape_cast %8 : vector<128xf32> to vector<1x128xf32>
    %10 = math.log %9 : vector<1x128xf32>
    %11 = arith.addf %4, %10 : vector<1x128xf32>
    %12 = tpu.iota {dimensions = array<i32: 0>} : vector<4x128xi32>
    %13 = vector.broadcast %1 : vector<1x128xi32> to vector<4x128xi32>
    %14 = arith.cmpi eq, %12, %13 : vector<4x128xi32>
    %cst_6 = arith.constant 0.000000e+00 : f32
    %15 = vector.broadcast %cst_6 : f32 to vector<4x128xf32>
    %16 = arith.select %14, %0, %15 : vector<4x128xi1>, vector<4x128xf32>
    %cst_7 = arith.constant dense<0.000000e+00> : vector<128xf32>
    %17 = vector.multi_reduction <add>, %16, %cst_7 [0] : vector<4x128xf32> to vector<128xf32>
    %18 = vector.shape_cast %17 : vector<128xf32> to vector<1x128xf32>
    %cst_8 = arith.constant 0.000000e+00 : f32
    %19 = vector.shape_cast %2 : vector<4x1xf32> to vector<4x1xf32>
    %20 = vector.broadcast %19 : vector<4x1xf32> to vector<4x128xf32>
    %21 = vector.broadcast %cst_8 : f32 to vector<4x128xf32>
    %22 = arith.select %14, %20, %21 : vector<4x128xi1>, vector<4x128xf32>
    %cst_9 = arith.constant dense<0.000000e+00> : vector<128xf32>
    %23 = vector.multi_reduction <add>, %22, %cst_9 [0] : vector<4x128xf32> to vector<128xf32>
    %24 = vector.shape_cast %23 : vector<128xf32> to vector<1x128xf32>
    %25 = arith.subf %11, %18 : vector<1x128xf32>
    %cst_10 = arith.constant 0.000000e+00 : f32
    %26 = vector.broadcast %cst_10 : f32 to vector<1x128xf32>
    %27 = arith.subf %26, %25 : vector<1x128xf32>
    %28 = math.exp %27 : vector<1x128xf32>
    %cst_11 = arith.constant 1.000000e+00 : f32
    %29 = vector.broadcast %cst_11 : f32 to vector<1x128xf32>
    %30 = arith.subf %29, %28 : vector<1x128xf32>
    %cst_12 = arith.constant 0.000000e+00 : f32
    %31 = vector.broadcast %cst_12 : f32 to vector<1x128xf32>
    %32 = arith.maximumf %30, %31 : vector<1x128xf32>
    %33 = arith.mulf %32, %32 : vector<1x128xf32>
    %34 = arith.mulf %33, %32 : vector<1x128xf32>
    %35 = arith.mulf %24, %34 : vector<1x128xf32>
    %36 = arith.mulf %35, %25 : vector<1x128xf32>
    %c128_i32 = arith.constant 128 : i32
    %37 = arith.muli %arg0, %c128_i32 : i32
    %38 = tpu.iota {dimensions = array<i32: 1>} : vector<1x128xi32>
    %39 = vector.broadcast %37 : i32 to vector<1x128xi32>
    %40 = arith.addi %39, %38 : vector<1x128xi32>
    %c8_i32 = arith.constant 8 : i32
    %41 = vector.broadcast %c8_i32 : i32 to vector<1x128xi32>
    %42 = arith.cmpi slt, %40, %41 : vector<1x128xi32>
    %cst_13 = arith.constant 0.000000e+00 : f32
    %43 = vector.broadcast %cst_13 : f32 to vector<1x128xf32>
    %44 = arith.select %42, %36, %43 : vector<1x128xi1>, vector<1x128xf32>
    %45 = vector.shape_cast %44 : vector<1x128xf32> to vector<1x1x128xf32>
    %cst_14 = arith.constant dense<0.000000e+00> : vector<1xf32>
    %46 = vector.multi_reduction <add>, %45, %cst_14 [1, 2] : vector<1x1x128xf32> to vector<1xf32>
    %47 = vector.shape_cast %46 : vector<1xf32> to vector<1x1x1xf32>
    %48 = vector.extract %47[0, 0, 0] : f32 from vector<1x1x1xf32>
    %49 = tpu.iota {dimensions = array<i32: 0>} : vector<8x128xi32>
    %50 = tpu.iota {dimensions = array<i32: 1>} : vector<8x128xi32>
    %c0_i32 = arith.constant 0 : i32
    %51 = vector.broadcast %c0_i32 : i32 to vector<8x128xi32>
    %52 = arith.cmpi eq, %49, %51 : vector<8x128xi32>
    %c0_i32_15 = arith.constant 0 : i32
    %53 = vector.broadcast %c0_i32_15 : i32 to vector<8x128xi32>
    %54 = arith.cmpi eq, %50, %53 : vector<8x128xi32>
    %55 = arith.andi %52, %54 : vector<8x128xi1>
    %cst_16 = arith.constant 0.000000e+00 : f32
    %56 = vector.broadcast %48 : f32 to vector<8x128xf32>
    %57 = vector.broadcast %cst_16 : f32 to vector<8x128xf32>
    %58 = arith.select %55, %56, %57 : vector<8x128xi1>, vector<8x128xf32>
    %c0_17 = arith.constant 0 : index
    %c0_18 = arith.constant 0 : index
    %59 = vector.load %arg4[%c0_17, %c0_18] : memref<8x128xf32, #tpu.memory_space<vmem>>, vector<8x128xf32>
    tpu.vector_store %arg4[%c0_17, %c0_18], %58 {strides = array<i32>} : memref<8x128xf32, #tpu.memory_space<vmem>>, vector<8x128xf32>,
    return
  }
  func.func @transform_0(%arg0: i32) -> (i32, i32) {
    %c0_i32 = arith.constant 0 : i32
    %c0_i32_0 = arith.constant 0 : i32
    return %c0_i32, %arg0 : i32, i32
  }
  func.func @transform_1(%arg0: i32) -> (i32, i32) {
    %c0_i32 = arith.constant 0 : i32
    %c0_i32_0 = arith.constant 0 : i32
    return %c0_i32, %arg0 : i32, i32
  }
  func.func @transform_2(%arg0: i32) -> (i32, i32) {
    %c0_i32 = arith.constant 0 : i32
    %c0_i32_0 = arith.constant 0 : i32
    %c0_i32_1 = arith.constant 0 : i32
    return %c0_i32, %c0_i32_0 : i32, i32
  }
  func.func @transform_3(%arg0: i32) -> (i32, i32) {
    %c0_i32 = arith.constant 0 : i32
    %c0_i32_0 = arith.constant 0 : i32
    return %c0_i32, %arg0 : i32, i32
  }
}

</mosaic_0001>

<llo_original>
// kernel: tpu_custom_call.1
$region0: #{tpu_custom_call.1}
  #allocation0 [shape = 'u32[]', space=smem, size = 0x4, offset = 0x4, fixed_abs, tag = 'smem constant byte address 0x4 - core index']
  #allocation1 [shape = 'u32[144,128]{1,0:T(1,128)}', space=vmem, size = 0x12000, scoped, tag = 'internal scratch']
  %s0 = inlined_call_operand.vmem [shape: f32[4,128], index: 0, kind: input, shape index: {}]
  %s1 = inlined_call_operand.vmem [shape: s32[1,128], index: 1, kind: input, shape index: {}]
  %s2 = inlined_call_operand.vmem [shape: f32[4,1], index: 2, kind: input, shape index: {}]
  %s3 = inlined_call_operand.hbm [shape: f32[8,128], index: 3, kind: output, shape index: {}]
  %s4 = sld [smem:[#allocation0]]
  $region22: #{tpu_custom_call.1} parent=0
    _
  %s6 = ssub.s32 1, %s4
  %s7 = scalar_select 0, %s6, %s4
  $region1: #{tpu_custom_call.1} parent=0
    #allocation2 [shape = 'u8[4096]{0}', space=vmem, size = 0x1000, scoped, tag = 'output window, operand 0, single buffered']
    #allocation3 [shape = 's32[1]{0}', space=sflag, size = 0x4, scoped, tag = 'scoped memory for tpu_custom_call.1']
    %8 = vsyncpa [#allocation3], 0
    // Predicated region
    $region2: #{tpu_custom_call.1} parent=1 // pred_check
      _
    $region3: #{tpu_custom_call.1} parent=1 // pred_check_branch
      %10 = sbr.rel (0) target = $region5
    $region4: #{tpu_custom_call.1} parent=1 // pred_region
      _
    $region5: #{tpu_custom_call.1} parent=1 // pred_fallthru
      _
    // Predicated region
    $region6: #{tpu_custom_call.1} parent=1 // pred_check
      _
    $region7: #{tpu_custom_call.1} parent=1 // pred_check_branch
      %12 = sbr.rel (0) target = $region9
    $region8: #{tpu_custom_call.1} parent=1 // pred_region
      _
    $region9: #{tpu_custom_call.1} parent=1 // pred_fallthru
      _
    // Predicated region
    $region10: #{tpu_custom_call.1} parent=1 // pred_check
      _
    $region11: #{tpu_custom_call.1} parent=1 // pred_check_branch
      %14 = sbr.rel (0) target = $region13
    $region12: #{tpu_custom_call.1} parent=1 // pred_region
      _
    $region13: #{tpu_custom_call.1} parent=1 // pred_fallthru
      _
    %v15 = vld [vmem:[%s0] sm:$0xf]
    %v16 = vld [vmem:[%s1] sm:$0x1]
    %v17 = vld [vmem:[%s2] sm:$0xf]
    %vm18 = vcmask 1043456
    %v19 = vsel %vm18, %v15, -inf
    %v20 = vrot.slane %v19, 4
    %v21 = vmax.f32 %v19, %v20
    %v22 = vrot.slane %v21, 2
    %v23 = vmax.f32 %v21, %v22
    %v24 = vrot.slane %v23, 1
    %v25 = vmax.f32 %v23, %v24
    %v26 = vsub.f32 %v15, %v25
    %v27 = vmul.f32 %v26, 1.442695
    %v28 = vpow.pop %v27
    %v29 = vsel %vm18, %v28, 0.0
    %v30 = vrot.slane %v29, 4
    %v31 = vadd.f32 %v29, %v30
    %v32 = vrot.slane %v31, 2
    %v33 = vadd.f32 %v31, %v32
    %v34 = vrot.slane %v33, 1
    %v35 = vadd.f32 %v33, %v34
    %v36 = vlog2.pop %v35
    %v37 = vmul.f32 %v36, 0.6931472
    %v38 = vadd.f32 %v25, %v37
    %v39 = vlaneseq
    %v40 = vshrl.u32 %v39, 7
    %v41 = vlaneseq
    %v42 = vshrl.u32 %v41, 7
    %v43 = vsub.s32 0, %v42
    %v44 = vrot.slane %v16, %v43
    %vm45 = vcmp.eq.s32.totalorder %v40, %v44
    %v46 = vsel %vm45, %v15, 0.0
    %v47 = vsel %vm18, %v46, 0.0
    %v48 = vrot.slane %v47, 4
    %v49 = vadd.f32 %v47, %v48
    %v50 = vrot.slane %v49, 2
    %v51 = vadd.f32 %v49, %v50
    %v52 = vrot.slane %v51, 1
    %v53 = vadd.f32 %v51, %v52
    %55 = vset.pattern.permute.xlu0 0
    %56 = vperm.xlu0 %55, %v17
    %v57 = vpop.permute.xlu0 %56
    %v59 = vsel %vm45, %v57, 0.0
    %v60 = vsel %vm18, %v59, 0.0
    %v61 = vrot.slane %v60, 4
    %v62 = vadd.f32 %v60, %v61
    %v63 = vrot.slane %v62, 2
    %v64 = vadd.f32 %v62, %v63
    %v65 = vrot.slane %v64, 1
    %v66 = vadd.f32 %v64, %v65
    %v67 = vsub.f32 %v38, %v53
    %v68 = vsub.f32 0.0, %v67
    %v69 = vmul.f32 %v68, 1.442695
    %v70 = vpow.pop %v69
    %v71 = vsub.f32 1.0, %v70
    %v72 = vmax.f32 %v71, 0.0
    %v73 = vmul.f32 %v72, %v72
    %v74 = vmul.f32 %v73, %v72
    %v75 = vmul.f32 %v66, %v74
    %v76 = vmul.f32 %v75, %v67
    %s77 = smul.u32 0, 128
    %v78 = vlaneseq
    %v79 = vand.u32 %v78, 127
    %v80 = vstv %s77
    %v81 = vadd.s32 %v80, %v79
    %vm82 = vcmp.lt.s32.totalorder %v81, 8
    %v83 = vsel %vm82, %v76, 0.0
    %vm84 = vcmask 1040384
    %v85 = vsel %vm84, %v83, 0.0
    %86 = vadd.xlane.f32.xlu0 %v85
    %v87 = vpop.xlane.xlu0 %86
    %v88 = vrot.slane %v87, 4
    %v89 = vadd.f32 %v87, %v88
    %v90 = vrot.slane %v89, 2
    %v91 = vadd.f32 %v89, %v90
    %v92 = vrot.slane %v91, 1
    %v93 = vadd.f32 %v91, %v92
    %s94 = vtos %v93
    %vm95 = vcmp.eq.s32.totalorder %v40, 0
    %vm96 = vcmp.eq.s32.totalorder %v79, 0
    %vm97 = vmand %vm95, %vm96
    %v98 = vstv %s94
    %v99 = vsel %vm97, %v98, 0.0
    %100 = vst [vmem:[#allocation2] sm:$0xff] %v99
    // Predicated region
    $region14: #{tpu_custom_call.1} parent=1 // pred_check
      _
    $region15: #{tpu_custom_call.1} parent=1 // pred_check_branch
      %102 = sbr.rel (0) target = $region17
    $region16: #{tpu_custom_call.1} parent=1 // pred_region
      %s104 = ssub.s32 128, 128
      %105 = vsyncadd [#allocation3], %s104
      %s107 = sshll.u32 [#allocation2], 4
      %s108 = int_to_ptr.vmem [resolvable:$true] %s107
      %110 = dma.vmem_to_hbm [thread:$0]  %s108, 128, %s3, [#allocation3]
    $region17: #{tpu_custom_call.1} parent=1 // pred_fallthru
      _
    // Predicated region
    $region18: #{tpu_custom_call.1} parent=1 // pred_check
      _
    $region19: #{tpu_custom_call.1} parent=1 // pred_check_branch
      %112 = sbr.rel (0) target = $region21
    $region20: #{tpu_custom_call.1} parent=1 // pred_region
      %113 = dma.done [#allocation3], 128
    $region21: #{tpu_custom_call.1} parent=1 // pred_fallthru
      _
    %114 = vsyncpa [#allocation3], 1

</llo_original>
